<compile_context>
chip_gen: v6e
topology: v6e:2x2x1
jax: 0.10.0
libtpu: 0.0.40
codegen_flags: <defaults>
</compile_context>

<pallas_src>
import jax
import jax.numpy as jnp
import numpy as np
from jax.experimental import pallas as pl
from jax.experimental.pallas import tpu as pltpu

B = 2      # users per batch
T = 8      # max tweets per user
S = 16     # tokens per tweet
D = 32     # student hidden size (dim_emb)
LANE = 128
SUBLANE = 8


# ---------------------------------------------------------------------------
# Fused kernel: masked token-mean pooling -> per-user tweet mean -> classifier.
# ---------------------------------------------------------------------------
def _student_kernel(hid_ref, mask_ref, valid_ref, wc_ref, bc_ref,
                    emb_ref, logits_ref):
    h = hid_ref[...]                  # (B, T, S, D)  student last hidden states
    m = mask_ref[...]                 # (B, T, S)     token attention mask (float)
    valid = valid_ref[...]            # (B, T)        1.0 for real tweets, 0.0 padding

    # get_pool_emb, pool_strategy == "mean": masked mean over tokens.
    # TODO(synk): other pool strategies of get_pool_emb (cls/max/...) not implemented.
    num = jnp.sum(h * m[..., None], axis=2)                            # (B, T, D)
    den = jnp.maximum(jnp.sum(m, axis=2, keepdims=True), 1e-9)         # (B, T, 1)
    emb = num / den                                                    # exact divide (parity)
    emb_ref[...] = emb.reshape(B, T * D)                               # lane-dense store

    # torch.mean(emb_tweets[:len_real], dim=0) per user.  Precondition: len_real >= 1.
    usum = jnp.sum(emb * valid[..., None], axis=1)                     # (B, D)
    ucnt = jnp.maximum(jnp.sum(valid, axis=1, keepdims=True), 1.0)     # (B, 1)
    emb_user = usum * pl.reciprocal(ucnt, approx=True)                 # EUP slot

    # classifier: Linear(D -> 2) with native PyTorch (out=2, in=D) weight layout.
    # Kept on VPU + XLU (cross-lane reduce); 128 MACs don't justify an MXU push/pop.
    w = wc_ref[...]                                                    # (2, D)
    logits = jnp.sum(emb_user[:, None, :] * w[None, :, :], axis=-1) \
        + bc_ref[...]                                                  # (B, 2)
    # Full (8, 128) vreg tile -> unmasked vst; wrapper slices [:B, :2].
    logits_ref[...] = jnp.pad(logits, ((0, SUBLANE - B), (0, LANE - 2)))


def _full_spec(shape):
    n = len(shape)
    return pl.BlockSpec(shape, lambda i, _n=n: (0,) * _n)


_COST = pl.CostEstimate(
    flops=2 * B * T * S * D        # masked pooling mult-adds
          + 2 * B * T * D          # user-mean accumulation
          + 2 * B * D * 2,         # classifier
    transcendentals=B * T + B,     # divides / reciprocals
    bytes_accessed=4 * (B * T * S * D + B * T * S + B * T
                        + 2 * D + 2 + B * T * D + SUBLANE * LANE),
)


@jax.jit
def _forward_core(hidden_states, token_mask, len_real, classifier_w, classifier_b):
    """Jitted core: validity mask + fused Pallas kernel + cheap reshapes/slices."""
    tweet_valid = (jnp.arange(T, dtype=jnp.int32)[None, :]
                   < len_real[:, None]).astype(jnp.float32)             # (B, T)

    emb_flat, logits_slab = pl.pallas_call(
        _student_kernel,
        out_shape=(
            jax.ShapeDtypeStruct((B, T * D), jnp.float32),              # lane-dense emb
            jax.ShapeDtypeStruct((SUBLANE, LANE), jnp.float32),          # full-tile logits
        ),
        grid=(1,),                                                       # single fused step
        in_specs=[
            _full_spec((B, T, S, D)),
            _full_spec((B, T, S)),
            _full_spec((B, T)),
            _full_spec((2, D)),
            _full_spec((1, 2)),
        ],
        out_specs=[
            _full_spec((B, T * D)),
            _full_spec((SUBLANE, LANE)),
        ],
        compiler_params=pltpu.CompilerParams(dimension_semantics=("arbitrary",)),
        cost_estimate=_COST,
    )(hidden_states, token_mask, tweet_valid, classifier_w, classifier_b)

    emb_padded = emb_flat.reshape(B, T, D)
    logits = logits_slab[:B, :2]
    return emb_padded, logits


def student_mlp_forward(hidden_states, token_mask, len_real, emb_teacher,
                        classifier_w, classifier_b):
    len_dev = jnp.asarray(len_real, jnp.int32)
    emb_padded, logits = _forward_core(hidden_states, token_mask, len_dev,
                                       classifier_w, classifier_b)

    # Ragged torch.cat of per-user [:len_real] slices.  len_real defines the OUTPUT
    # SHAPE, so it must be concrete; build a flat gather index on host (tiny ints)
    # and gather ON DEVICE with jnp.take — no D2H of the embeddings.
    len_np = np.asarray(len_real).astype(np.int64)
    flat_idx = jnp.asarray(np.concatenate(
        [u * T + np.arange(int(l)) for u, l in enumerate(len_np)]).astype(np.int32))
    emb_student = jnp.take(emb_padded.reshape(B * T, D), flat_idx, axis=0)
    emb_teacher_cat = jnp.take(emb_teacher.reshape(B * T, D), flat_idx, axis=0)

    return {"logits": logits,
            "emb_teacher": emb_teacher_cat,
            "emb_student": emb_student}


if __name__ == "__main__":
    key = jax.random.PRNGKey(0)
    k_hid, k_tea, k_len, k_w = jax.random.split(key, 4)

    # Synthetic per-token hidden states standing in for the HF student encoder output.
    hidden_states = jax.random.normal(k_hid, (B, T, S, D), jnp.float32)
    tok_len = jax.random.randint(k_len, (B, T), 3, S + 1)
    token_mask = (jnp.arange(S)[None, None, :]
                  < tok_len[:, :, None]).astype(jnp.float32)            # (B, T, S)
    len_real = np.array([T, 5], dtype=np.int32)          # real tweets per user (>= 1)
    emb_teacher = jax.random.normal(k_tea, (B, T, D), jnp.float32)

    classifier_w = 0.02 * jax.random.normal(k_w, (2, D), jnp.float32)   # PyTorch (out, in)
    classifier_b = jnp.zeros((1, 2), jnp.float32)

    out = student_mlp_forward(hidden_states, token_mask, len_real, emb_teacher,
                              classifier_w, classifier_b)
    logits = jax.block_until_ready(out["logits"])
    emb_student = jax.block_until_ready(out["emb_student"])
    emb_teacher_cat = jax.block_until_ready(out["emb_teacher"])

    # Pure-JAX reference of the same forward.
    num = jnp.sum(hidden_states * token_mask[..., None], axis=2)
    den = jnp.maximum(jnp.sum(token_mask, axis=2, keepdims=True), 1e-9)
    emb_ref = num / den                                                   # (B, T, D)
    valid_f = (jnp.arange(T)[None, :] < jnp.asarray(len_real)[:, None]).astype(jnp.float32)
    emb_user_ref = (jnp.sum(emb_ref * valid_f[..., None], axis=1)
                    / jnp.maximum(jnp.sum(valid_f, axis=1, keepdims=True), 1.0))
    logits_ref = emb_user_ref @ classifier_w.T + classifier_b             # (B, 2)

    valid_np = np.arange(T)[None, :] < len_real[:, None]
    emb_student_ref = np.asarray(emb_ref)[valid_np]
    emb_teacher_ref = np.asarray(emb_teacher)[valid_np]

    n_real = int(np.sum(len_real))
    assert logits.shape == (B, 2)
    assert emb_student.shape == (n_real, D)
    assert emb_teacher_cat.shape == (n_real, D)
    assert bool(jnp.all(jnp.isfinite(logits)))
    assert np.allclose(np.asarray(emb_student), emb_student_ref, rtol=1e-5, atol=1e-5)
    assert np.allclose(np.asarray(emb_teacher_cat), emb_teacher_ref)
    assert np.allclose(np.asarray(logits), np.asarray(logits_ref), rtol=1e-2, atol=1e-2)
    print("KERNEL_OK")
</pallas_src>

<mosaic_0001>
module attributes {stable_mosaic.version = 11 : i64} {
  func.func @_student_kernel(%arg0: i32, %arg1: memref<2x8x16x32xf32, #tpu.memory_space<vmem>>, %arg2: memref<2x8x16xf32, #tpu.memory_space<vmem>>, %arg3: memref<2x8xf32, #tpu.memory_space<vmem>>, %arg4: memref<2x32xf32, #tpu.memory_space<vmem>>, %arg5: memref<1x2xf32, #tpu.memory_space<vmem>>, %arg6: memref<2x256xf32, #tpu.memory_space<vmem>>, %arg7: memref<8x128xf32, #tpu.memory_space<vmem>>) attributes {dimension_semantics = [#tpu.dimension_semantics<arbitrary>], iteration_bounds = array<i64: 1>, scalar_prefetch = 0 : i64, scratch_operands = 0 : i64, tpu.core_type = #tpu.core_type<tc>, window_params = [{pipeline_mode = #tpu.pipeline_mode<synchronous>, transform_indices = @transform_0, window_bounds = array<i64: 2, 8, 16, 32>}, {pipeline_mode = #tpu.pipeline_mode<synchronous>, transform_indices = @transform_1, window_bounds = array<i64: 2, 8, 16>}, {pipeline_mode = #tpu.pipeline_mode<synchronous>, transform_indices = @transform_2, window_bounds = array<i64: 2, 8>}, {pipeline_mode = #tpu.pipeline_mode<synchronous>, transform_indices = @transform_3, window_bounds = array<i64: 2, 32>}, {pipeline_mode = #tpu.pipeline_mode<synchronous>, transform_indices = @transform_4, window_bounds = array<i64: 1, 2>}, {pipeline_mode = #tpu.pipeline_mode<synchronous>, transform_indices = @transform_5, window_bounds = array<i64: 2, 256>}, {pipeline_mode = #tpu.pipeline_mode<synchronous>, transform_indices = @transform_6, window_bounds = array<i64: 8, 128>}]} {
    %c0 = arith.constant 0 : index
    %c0_0 = arith.constant 0 : index
    %c0_1 = arith.constant 0 : index
    %c0_2 = arith.constant 0 : index
    %0 = vector.load %arg1[%c0, %c0_0, %c0_1, %c0_2] : memref<2x8x16x32xf32, #tpu.memory_space<vmem>>, vector<2x8x16x32xf32>
    %c0_3 = arith.constant 0 : index
    %c0_4 = arith.constant 0 : index
    %c0_5 = arith.constant 0 : index
    %1 = vector.load %arg2[%c0_3, %c0_4, %c0_5] : memref<2x8x16xf32, #tpu.memory_space<vmem>>, vector<2x8x16xf32>
    %c0_6 = arith.constant 0 : index
    %c0_7 = arith.constant 0 : index
    %2 = vector.load %arg3[%c0_6, %c0_7] : memref<2x8xf32, #tpu.memory_space<vmem>>, vector<2x8xf32>
    %3 = vector.shape_cast %1 : vector<2x8x16xf32> to vector<2x8x16x1xf32>
    %4 = vector.broadcast %3 : vector<2x8x16x1xf32> to vector<2x8x16x32xf32>
    %5 = arith.mulf %0, %4 : vector<2x8x16x32xf32>
    %cst = arith.constant dense<0.000000e+00> : vector<2x8x32xf32>
    %6 = vector.multi_reduction <add>, %5, %cst [2] : vector<2x8x16x32xf32> to vector<2x8x32xf32>
    %cst_8 = arith.constant dense<0.000000e+00> : vector<2x8xf32>
    %7 = vector.multi_reduction <add>, %1, %cst_8 [2] : vector<2x8x16xf32> to vector<2x8xf32>
    %8 = vector.shape_cast %7 : vector<2x8xf32> to vector<2x8x1xf32>
    %cst_9 = arith.constant 9.99999971E-10 : f32
    %9 = vector.broadcast %cst_9 : f32 to vector<2x8x1xf32>
    %10 = arith.maximumf %8, %9 : vector<2x8x1xf32>
    %11 = vector.broadcast %10 : vector<2x8x1xf32> to vector<2x8x32xf32>
    %12 = arith.divf %6, %11 : vector<2x8x32xf32>
    %13 = vector.shape_cast %12 : vector<2x8x32xf32> to vector<2x256xf32>
    %c0_10 = arith.constant 0 : index
    %c0_11 = arith.constant 0 : index
    %14 = vector.load %arg6[%c0_10, %c0_11] : memref<2x256xf32, #tpu.memory_space<vmem>>, vector<2x256xf32>
    tpu.vector_store %arg6[%c0_10, %c0_11], %13 {strides = array<i32>} : memref<2x256xf32, #tpu.memory_space<vmem>>, vector<2x256xf32>,
    %15 = vector.shape_cast %2 : vector<2x8xf32> to vector<2x8x1xf32>
    %16 = vector.broadcast %15 : vector<2x8x1xf32> to vector<2x8x32xf32>
    %17 = arith.mulf %12, %16 : vector<2x8x32xf32>
    %cst_12 = arith.constant dense<0.000000e+00> : vector<2x32xf32>
    %18 = vector.multi_reduction <add>, %17, %cst_12 [1] : vector<2x8x32xf32> to vector<2x32xf32>
    %cst_13 = arith.constant dense<0.000000e+00> : vector<2xf32>
    %19 = vector.multi_reduction <add>, %2, %cst_13 [1] : vector<2x8xf32> to vector<2xf32>
    %20 = vector.shape_cast %19 : vector<2xf32> to vector<2x1xf32>
    %cst_14 = arith.constant 1.000000e+00 : f32
    %21 = vector.broadcast %cst_14 : f32 to vector<2x1xf32>
    %22 = arith.maximumf %20, %21 : vector<2x1xf32>
    %23 = tpu.reciprocal %22 {approx = true} : vector<2x1xf32> -> vector<2x1xf32>
    %24 = vector.broadcast %23 : vector<2x1xf32> to vector<2x32xf32>
    %25 = arith.mulf %18, %24 : vector<2x32xf32>
    %c0_15 = arith.constant 0 : index
    %c0_16 = arith.constant 0 : index
    %26 = vector.load %arg4[%c0_15, %c0_16] : memref<2x32xf32, #tpu.memory_space<vmem>>, vector<2x32xf32>
    %27 = vector.shape_cast %25 : vector<2x32xf32> to vector<2x1x32xf32>
    %28 = vector.shape_cast %26 : vector<2x32xf32> to vector<1x2x32xf32>
    %29 = vector.broadcast %27 : vector<2x1x32xf32> to vector<2x2x32xf32>
    %30 = vector.broadcast %28 : vector<1x2x32xf32> to vector<2x2x32xf32>
    %31 = arith.mulf %29, %30 : vector<2x2x32xf32>
    %cst_17 = arith.constant dense<0.000000e+00> : vector<2x2xf32>
    %32 = vector.multi_reduction <add>, %31, %cst_17 [2] : vector<2x2x32xf32> to vector<2x2xf32>
    %c0_18 = arith.constant 0 : index
    %c0_19 = arith.constant 0 : index
    %33 = vector.load %arg5[%c0_18, %c0_19] : memref<1x2xf32, #tpu.memory_space<vmem>>, vector<1x2xf32>
    %34 = vector.broadcast %33 : vector<1x2xf32> to vector<2x2xf32>
    %35 = arith.addf %32, %34 : vector<2x2xf32>
    %c0_i32 = arith.constant 0 : i32
    %36 = arith.sitofp %c0_i32 : i32 to f32
    %37 = vector.broadcast %36 : f32 to vector<6x2xf32>
    %38 = tpu.concatenate %35, %37 in 0 : vector<2x2xf32>, vector<6x2xf32> -> vector<8x2xf32>
    %39 = vector.broadcast %36 : f32 to vector<8x126xf32>
    %40 = tpu.concatenate %38, %39 in 1 : vector<8x2xf32>, vector<8x126xf32> -> vector<8x128xf32>
    %c0_20 = arith.constant 0 : index
    %c0_21 = arith.constant 0 : index
    %41 = vector.load %arg7[%c0_20, %c0_21] : memref<8x128xf32, #tpu.memory_space<vmem>>, vector<8x128xf32>
    tpu.vector_store %arg7[%c0_20, %c0_21], %40 {strides = array<i32>} : memref<8x128xf32, #tpu.memory_space<vmem>>, vector<8x128xf32>,
    return
  }
  func.func @transform_0(%arg0: i32) -> (i32, i32, i32, i32) {
    %c0_i32 = arith.constant 0 : i32
    %c0_i32_0 = arith.constant 0 : i32
    %c0_i32_1 = arith.constant 0 : i32
    %c0_i32_2 = arith.constant 0 : i32
    %c0_i32_3 = arith.constant 0 : i32
    return %c0_i32, %c0_i32_0, %c0_i32_1, %c0_i32_2 : i32, i32, i32, i32
  }
  func.func @transform_1(%arg0: i32) -> (i32, i32, i32) {
    %c0_i32 = arith.constant 0 : i32
    %c0_i32_0 = arith.constant 0 : i32
    %c0_i32_1 = arith.constant 0 : i32
    %c0_i32_2 = arith.constant 0 : i32
    return %c0_i32, %c0_i32_0, %c0_i32_1 : i32, i32, i32
  }
  func.func @transform_2(%arg0: i32) -> (i32, i32) {
    %c0_i32 = arith.constant 0 : i32
    %c0_i32_0 = arith.constant 0 : i32
    %c0_i32_1 = arith.constant 0 : i32
    return %c0_i32, %c0_i32_0 : i32, i32
  }
  func.func @transform_3(%arg0: i32) -> (i32, i32) {
    %c0_i32 = arith.constant 0 : i32
    %c0_i32_0 = arith.constant 0 : i32
    %c0_i32_1 = arith.constant 0 : i32
    return %c0_i32, %c0_i32_0 : i32, i32
  }
  func.func @transform_4(%arg0: i32) -> (i32, i32) {
    %c0_i32 = arith.constant 0 : i32
    %c0_i32_0 = arith.constant 0 : i32
    %c0_i32_1 = arith.constant 0 : i32
    return %c0_i32, %c0_i32_0 : i32, i32
  }
  func.func @transform_5(%arg0: i32) -> (i32, i32) {
    %c0_i32 = arith.constant 0 : i32
    %c0_i32_0 = arith.constant 0 : i32
    %c0_i32_1 = arith.constant 0 : i32
    return %c0_i32, %c0_i32_0 : i32, i32
  }
  func.func @transform_6(%arg0: i32) -> (i32, i32) {
    %c0_i32 = arith.constant 0 : i32
    %c0_i32_0 = arith.constant 0 : i32
    %c0_i32_1 = arith.constant 0 : i32
    return %c0_i32, %c0_i32_0 : i32, i32
  }
}

</mosaic_0001>

<llo_original>
// kernel: _forward_core.1
$region0: #{_forward_core.1}
  #allocation0 [shape = 'u32[]', space=smem, size = 0x4, offset = 0x4, fixed_abs, tag = 'smem constant byte address 0x4 - core index']
  #allocation1 [shape = 'u32[144,128]{1,0:T(1,128)}', space=vmem, size = 0x12000, scoped, tag = 'internal scratch']
  %s0 = inlined_call_operand.hbm [shape: f32[2,8,16,32], index: 0, kind: input, shape index: {}]
  %s1 = inlined_call_operand.hbm [shape: f32[2,8,16], index: 1, kind: input, shape index: {}]
  %s2 = inlined_call_operand.vmem [shape: f32[2,8], index: 2, kind: input, shape index: {}]
  %s3 = inlined_call_operand.vmem [shape: f32[2,32], index: 3, kind: input, shape index: {}]
  %s4 = inlined_call_operand.vmem [shape: f32[1,2], index: 4, kind: input, shape index: {}]
  %s5 = inlined_call_operand.vmem [shape: f32[2,256], index: 5, kind: output, shape index: {0}]
  %s6 = inlined_call_operand.vmem [shape: f32[8,128], index: 6, kind: output, shape index: {1}]
  %7 = xla_tuple %s5, %s6
  %s8 = sld [smem:[#allocation0]]
  $region46: #{_forward_core.1} parent=0
    _
  %s10 = ssub.s32 1, %s8
  %s11 = scalar_select 0, %s10, %s8
  $region1: #{_forward_core.1} parent=0
    #allocation2 [shape = 'u8[131072]{0}', space=vmem, size = 0x20000, scoped, tag = 'input window, operand 0, single buffered']
    #allocation3 [shape = 's32[1]{0}', space=sflag, size = 0x4, scoped, tag = 'scoped memory for _forward_core.1']
    #allocation4 [shape = 'u8[8192]{0}', space=vmem, size = 0x2000, scoped, tag = 'input window, operand 1, single buffered']
    #allocation5 [shape = 's32[1]{0}', space=sflag, size = 0x4, scoped, tag = 'scoped memory for _forward_core.1']
    %12 = vsyncpa [#allocation3], 0
    %13 = vsyncpa [#allocation5], 0
    // Predicated region
    $region2: #{_forward_core.1} parent=1 // pred_check
      _
    $region3: #{_forward_core.1} parent=1 // pred_check_branch
      %15 = sbr.rel (0) target = $region5
    $region4: #{_forward_core.1} parent=1 // pred_region
      %s17 = ssub.s32 4096, 4096
      %18 = vsyncadd [#allocation3], %s17
      %s19 = sshll.u32 [#allocation2], 4
      %s20 = int_to_ptr.vmem [resolvable:$true] %s19
      %25 = dma.hbm_to_vmem [thread:$0]  %s0, 4096, %s20, [#allocation3], 128, 128, 8
    $region5: #{_forward_core.1} parent=1 // pred_fallthru
      _
    // Predicated region
    $region6: #{_forward_core.1} parent=1 // pred_check
      _
    $region7: #{_forward_core.1} parent=1 // pred_check_branch
      %27 = sbr.rel (0) target = $region9
    $region8: #{_forward_core.1} parent=1 // pred_region
      %s29 = ssub.s32 256, 256
      %30 = vsyncadd [#allocation5], %s29
      %s31 = sshll.u32 [#allocation4], 4
      %s32 = int_to_ptr.vmem [resolvable:$true] %s31
      %37 = dma.hbm_to_vmem [thread:$0]  %s1, 256, %s32, [#allocation5], 128, 128, 8
    $region9: #{_forward_core.1} parent=1 // pred_fallthru
      _
    // Predicated region
    $region10: #{_forward_core.1} parent=1 // pred_check
      _
    $region11: #{_forward_core.1} parent=1 // pred_check_branch
      %39 = sbr.rel (0) target = $region13
    $region12: #{_forward_core.1} parent=1 // pred_region
      _
    $region13: #{_forward_core.1} parent=1 // pred_fallthru
      _
    // Predicated region
    $region14: #{_forward_core.1} parent=1 // pred_check
      _
    $region15: #{_forward_core.1} parent=1 // pred_check_branch
      %41 = sbr.rel (0) target = $region17
    $region16: #{_forward_core.1} parent=1 // pred_region
      _
    $region17: #{_forward_core.1} parent=1 // pred_fallthru
      _
    // Predicated region
    $region18: #{_forward_core.1} parent=1 // pred_check
      _
    $region19: #{_forward_core.1} parent=1 // pred_check_branch
      %43 = sbr.rel (0) target = $region21
    $region20: #{_forward_core.1} parent=1 // pred_region
      _
    $region21: #{_forward_core.1} parent=1 // pred_fallthru
      _
    // Predicated region
    $region22: #{_forward_core.1} parent=1 // pred_check
      _
    $region23: #{_forward_core.1} parent=1 // pred_check_branch
      %45 = sbr.rel (0) target = $region25
    $region24: #{_forward_core.1} parent=1 // pred_region
      %46 = dma.done [#allocation3], 4096
    $region25: #{_forward_core.1} parent=1 // pred_fallthru
      _
    // Predicated region
    $region26: #{_forward_core.1} parent=1 // pred_check
      _
    $region27: #{_forward_core.1} parent=1 // pred_check_branch
      %48 = sbr.rel (0) target = $region29
    $region28: #{_forward_core.1} parent=1 // pred_region
      %49 = dma.done [#allocation5], 256
    $region29: #{_forward_core.1} parent=1 // pred_fallthru
      _
    %v50 = vld [vmem:[#allocation2] sm:$0xff]
    %v51 = vld [vmem:[#allocation2 + $0x8] sm:$0xff]
    %v52 = vld [vmem:[#allocation2 + $0x10] sm:$0xff]
    %v53 = vld [vmem:[#allocation2 + $0x18] sm:$0xff]
    %v54 = vld [vmem:[#allocation2 + $0x20] sm:$0xff]
    %v55 = vld [vmem:[#allocation2 + $0x28] sm:$0xff]
    %v56 = vld [vmem:[#allocation2 + $0x30] sm:$0xff]
    %v57 = vld [vmem:[#allocation2 + $0x38] sm:$0xff]
    %v58 = vld [vmem:[#allocation2 + $0x40] sm:$0xff]
    %v59 = vld [vmem:[#allocation2 + $0x48] sm:$0xff]
    %v60 = vld [vmem:[#allocation2 + $0x50] sm:$0xff]
    %v61 = vld [vmem:[#allocation2 + $0x58] sm:$0xff]
    %v62 = vld [vmem:[#allocation2 + $0x60] sm:$0xff]
    %v63 = vld [vmem:[#allocation2 + $0x68] sm:$0xff]
    %v64 = vld [vmem:[#allocation2 + $0x70] sm:$0xff]
    %v65 = vld [vmem:[#allocation2 + $0x78] sm:$0xff]
    %v66 = vld [vmem:[#allocation2 + $0x80] sm:$0xff]
    %v67 = vld [vmem:[#allocation2 + $0x88] sm:$0xff]
    %v68 = vld [vmem:[#allocation2 + $0x90] sm:$0xff]
    %v69 = vld [vmem:[#allocation2 + $0x98] sm:$0xff]
    %v70 = vld [vmem:[#allocation2 + $0xa0] sm:$0xff]
    %v71 = vld [vmem:[#allocation2 + $0xa8] sm:$0xff]
    %v72 = vld [vmem:[#allocation2 + $0xb0] sm:$0xff]
    %v73 = vld [vmem:[#allocation2 + $0xb8] sm:$0xff]
    %v74 = vld [vmem:[#allocation2 + $0xc0] sm:$0xff]
    %v75 = vld [vmem:[#allocation2 + $0xc8] sm:$0xff]
    %v76 = vld [vmem:[#allocation2 + $0xd0] sm:$0xff]
    %v77 = vld [vmem:[#allocation2 + $0xd8] sm:$0xff]
    %v78 = vld [vmem:[#allocation2 + $0xe0] sm:$0xff]
    %v79 = vld [vmem:[#allocation2 + $0xe8] sm:$0xff]
    %v80 = vld [vmem:[#allocation2 + $0xf0] sm:$0xff]
    %v81 = vld [vmem:[#allocation2 + $0xf8] sm:$0xff]
    %v82 = vld [vmem:[#allocation4] sm:$0xff]
    %v83 = vld [vmem:[#allocation4 + $0x8] sm:$0xff]
    %v84 = vld [vmem:[%s2] sm:$0x3]
    %v85 = vlaneseq
    %v86 = vshrl.u32 %v85, 7
    %v87 = vsub.s32 0, %v86
    %v88 = vrot.slane %v82, %v87
    %90 = vbcast.lane.b32.xlu0 %v88, 256
    %v91 = vpop.permute.xlu0 %90
    %s93 = sor.u32 256, 8
    %94 = vbcast.lane.b32.xlu0 %v88, %s93
    %v95 = vpop.permute.xlu0 %94
    %v96 = vlaneseq
    %v97 = vshrl.u32 %v96, 7
    %v98 = vsub.s32 1, %v97
    %v99 = vrot.slane %v82, %v98
    %101 = vbcast.lane.b32.xlu0 %v99, 256
    %v102 = vpop.permute.xlu0 %101
    %s104 = sor.u32 256, 8
    %105 = vbcast.lane.b32.xlu0 %v99, %s104
    %v106 = vpop.permute.xlu0 %105
    %v107 = vlaneseq
    %v108 = vshrl.u32 %v107, 7
    %v109 = vsub.s32 2, %v108
    %v110 = vrot.slane %v82, %v109
    %112 = vbcast.lane.b32.xlu0 %v110, 256
    %v113 = vpop.permute.xlu0 %112
    %s115 = sor.u32 256, 8
    %116 = vbcast.lane.b32.xlu0 %v110, %s115
    %v117 = vpop.permute.xlu0 %116
    %v118 = vlaneseq
    %v119 = vshrl.u32 %v118, 7
    %v120 = vsub.s32 3, %v119
    %v121 = vrot.slane %v82, %v120
    %123 = vbcast.lane.b32.xlu0 %v121, 256
    %v124 = vpop.permute.xlu0 %123
    %s126 = sor.u32 256, 8
    %127 = vbcast.lane.b32.xlu0 %v121, %s126
    %v128 = vpop.permute.xlu0 %127
    %v129 = vlaneseq
    %v130 = vshrl.u32 %v129, 7
    %v131 = vsub.s32 4, %v130
    %v132 = vrot.slane %v82, %v131
    %134 = vbcast.lane.b32.xlu0 %v132, 256
    %v135 = vpop.permute.xlu0 %134
    %s137 = sor.u32 256, 8
    %138 = vbcast.lane.b32.xlu0 %v132, %s137
    %v139 = vpop.permute.xlu0 %138
    %v140 = vlaneseq
    %v141 = vshrl.u32 %v140, 7
    %v142 = vsub.s32 5, %v141
    %v143 = vrot.slane %v82, %v142
    %145 = vbcast.lane.b32.xlu0 %v143, 256
    %v146 = vpop.permute.xlu0 %145
    %s148 = sor.u32 256, 8
    %149 = vbcast.lane.b32.xlu0 %v143, %s148
    %v150 = vpop.permute.xlu0 %149
    %v151 = vlaneseq
    %v152 = vshrl.u32 %v151, 7
    %v153 = vsub.s32 6, %v152
    %v154 = vrot.slane %v82, %v153
    %156 = vbcast.lane.b32.xlu0 %v154, 256
    %v157 = vpop.permute.xlu0 %156
    %s159 = sor.u32 256, 8
    %160 = vbcast.lane.b32.xlu0 %v154, %s159
    %v161 = vpop.permute.xlu0 %160
    %v162 = vlaneseq
    %v163 = vshrl.u32 %v162, 7
    %v164 = vsub.s32 7, %v163
    %v165 = vrot.slane %v82, %v164
    %167 = vbcast.lane.b32.xlu0 %v165, 256
    %v168 = vpop.permute.xlu0 %167
    %s170 = sor.u32 256, 8
    %171 = vbcast.lane.b32.xlu0 %v165, %s170
    %v172 = vpop.permute.xlu0 %171
    %v173 = vlaneseq
    %v174 = vshrl.u32 %v173, 7
    %v175 = vsub.s32 0, %v174
    %v176 = vrot.slane %v83, %v175
    %178 = vbcast.lane.b32.xlu0 %v176, 256
    %v179 = vpop.permute.xlu0 %178
    %s181 = sor.u32 256, 8
    %182 = vbcast.lane.b32.xlu0 %v176, %s181
    %v183 = vpop.permute.xlu0 %182
    %v184 = vlaneseq
    %v185 = vshrl.u32 %v184, 7
    %v186 = vsub.s32 1, %v185
    %v187 = vrot.slane %v83, %v186
    %189 = vbcast.lane.b32.xlu0 %v187, 256
    %v190 = vpop.permute.xlu0 %189
    %s192 = sor.u32 256, 8
    %193 = vbcast.lane.b32.xlu0 %v187, %s192
    %v194 = vpop.permute.xlu0 %193
    %v195 = vlaneseq
    %v196 = vshrl.u32 %v195, 7
    %v197 = vsub.s32 2, %v196
    %v198 = vrot.slane %v83, %v197
    %200 = vbcast.lane.b32.xlu0 %v198, 256
    %v201 = vpop.permute.xlu0 %200
    %s203 = sor.u32 256, 8
    %204 = vbcast.lane.b32.xlu0 %v198, %s203
    %v205 = vpop.permute.xlu0 %204
    %v206 = vlaneseq
    %v207 = vshrl.u32 %v206, 7
    %v208 = vsub.s32 3, %v207
    %v209 = vrot.slane %v83, %v208
    %211 = vbcast.lane.b32.xlu0 %v209, 256
    %v212 = vpop.permute.xlu0 %211
    %s214 = sor.u32 256, 8
    %215 = vbcast.lane.b32.xlu0 %v209, %s214
    %v216 = vpop.permute.xlu0 %215
    %v217 = vlaneseq
    %v218 = vshrl.u32 %v217, 7
    %v219 = vsub.s32 4, %v218
    %v220 = vrot.slane %v83, %v219
    %222 = vbcast.lane.b32.xlu0 %v220, 256
    %v223 = vpop.permute.xlu0 %222
    %s225 = sor.u32 256, 8
    %226 = vbcast.lane.b32.xlu0 %v220, %s225
    %v227 = vpop.permute.xlu0 %226
    %v228 = vlaneseq
    %v229 = vshrl.u32 %v228, 7
    %v230 = vsub.s32 5, %v229
    %v231 = vrot.slane %v83, %v230
    %233 = vbcast.lane.b32.xlu0 %v231, 256
    %v234 = vpop.permute.xlu0 %233
    %s236 = sor.u32 256, 8
    %237 = vbcast.lane.b32.xlu0 %v231, %s236
    %v238 = vpop.permute.xlu0 %237
    %v239 = vlaneseq
    %v240 = vshrl.u32 %v239, 7
    %v241 = vsub.s32 6, %v240
    %v242 = vrot.slane %v83, %v241
    %244 = vbcast.lane.b32.xlu0 %v242, 256
    %v245 = vpop.permute.xlu0 %244
    %s247 = sor.u32 256, 8
    %248 = vbcast.lane.b32.xlu0 %v242, %s247
    %v249 = vpop.permute.xlu0 %248
    %v250 = vlaneseq
    %v251 = vshrl.u32 %v250, 7
    %v252 = vsub.s32 7, %v251
    %v253 = vrot.slane %v83, %v252
    %255 = vbcast.lane.b32.xlu0 %v253, 256
    %v256 = vpop.permute.xlu0 %255
    %s258 = sor.u32 256, 8
    %259 = vbcast.lane.b32.xlu0 %v253, %s258
    %v260 = vpop.permute.xlu0 %259
    %v261 = vmul.f32 %v50, %v91
    %v262 = vmul.f32 %v51, %v95
    %v263 = vmul.f32 %v52, %v102
    %v264 = vmul.f32 %v53, %v106
    %v265 = vmul.f32 %v54, %v113
    %v266 = vmul.f32 %v55, %v117
    %v267 = vmul.f32 %v56, %v124
    %v268 = vmul.f32 %v57, %v128
    %v269 = vmul.f32 %v58, %v135
    %v270 = vmul.f32 %v59, %v139
    %v271 = vmul.f32 %v60, %v146
    %v272 = vmul.f32 %v61, %v150
    %v273 = vmul.f32 %v62, %v157
    %v274 = vmul.f32 %v63, %v161
    %v275 = vmul.f32 %v64, %v168
    %v276 = vmul.f32 %v65, %v172
    %v277 = vmul.f32 %v66, %v179
    %v278 = vmul.f32 %v67, %v183
    %v279 = vmul.f32 %v68, %v190
    %v280 = vmul.f32 %v69, %v194
    %v281 = vmul.f32 %v70, %v201
    %v282 = vmul.f32 %v71, %v205
    %v283 = vmul.f32 %v72, %v212
    %v284 = vmul.f32 %v73, %v216
    %v285 = vmul.f32 %v74, %v223
    %v286 = vmul.f32 %v75, %v227
    %v287 = vmul.f32 %v76, %v234
    %v288 = vmul.f32 %v77, %v238
    %v289 = vmul.f32 %v78, %v245
    %v290 = vmul.f32 %v79, %v249
    %v291 = vmul.f32 %v80, %v256
    %v292 = vmul.f32 %v81, %v260
    %vm293 = vcmask 261120
    %v294 = vsel %vm293, %v261, 0.0
    %v295 = vsel %vm293, %v262, 0.0
    %v296 = vadd.f32 %v294, %v295
    %v297 = vrot.slane %v296, 4
    %v298 = vadd.f32 %v296, %v297
    %v299 = vrot.slane %v298, 2
    %v300 = vadd.f32 %v298, %v299
    %v301 = vrot.slane %v300, 1
    %v302 = vadd.f32 %v300, %v301
    %v303 = vsel %vm293, %v263, 0.0
    %v304 = vsel %vm293, %v264, 0.0
    %v305 = vadd.f32 %v303, %v304
    %v306 = vrot.slane %v305, 4
    %v307 = vadd.f32 %v305, %v306
    %v308 = vrot.slane %v307, 2
    %v309 = vadd.f32 %v307, %v308
    %v310 = vrot.slane %v309, 1
    %v311 = vadd.f32 %v309, %v310
    %v312 = vsel %vm293, %v265, 0.0
    %v313 = vsel %vm293, %v266, 0.0
    %v314 = vadd.f32 %v312, %v313
    %v315 = vrot.slane %v314, 4
    %v316 = vadd.f32 %v314, %v315
    %v317 = vrot.slane %v316, 2
    %v318 = vadd.f32 %v316, %v317
    %v319 = vrot.slane %v318, 1
    %v320 = vadd.f32 %v318, %v319
    %v321 = vsel %vm293, %v267, 0.0
    %v322 = vsel %vm293, %v268, 0.0
    %v323 = vadd.f32 %v321, %v322
    %v324 = vrot.slane %v323, 4
    %v325 = vadd.f32 %v323, %v324
    %v326 = vrot.slane %v325, 2
    %v327 = vadd.f32 %v325, %v326
    %v328 = vrot.slane %v327, 1
    %v329 = vadd.f32 %v327, %v328
    %v330 = vsel %vm293, %v269, 0.0
    %v331 = vsel %vm293, %v270, 0.0
    %v332 = vadd.f32 %v330, %v331
    %v333 = vrot.slane %v332, 4
    %v334 = vadd.f32 %v332, %v333
    %v335 = vrot.slane %v334, 2
    %v336 = vadd.f32 %v334, %v335
    %v337 = vrot.slane %v336, 1
    %v338 = vadd.f32 %v336, %v337
    %v339 = vsel %vm293, %v271, 0.0
    %v340 = vsel %vm293, %v272, 0.0
    %v341 = vadd.f32 %v339, %v340
    %v342 = vrot.slane %v341, 4
    %v343 = vadd.f32 %v341, %v342
    %v344 = vrot.slane %v343, 2
    %v345 = vadd.f32 %v343, %v344
    %v346 = vrot.slane %v345, 1
    %v347 = vadd.f32 %v345, %v346
    %v348 = vsel %vm293, %v273, 0.0
    %v349 = vsel %vm293, %v274, 0.0
    %v350 = vadd.f32 %v348, %v349
    %v351 = vrot.slane %v350, 4
    %v352 = vadd.f32 %v350, %v351
    %v353 = vrot.slane %v352, 2
    %v354 = vadd.f32 %v352, %v353
    %v355 = vrot.slane %v354, 1
    %v356 = vadd.f32 %v354, %v355
    %v357 = vsel %vm293, %v275, 0.0
    %v358 = vsel %vm293, %v276, 0.0
    %v359 = vadd.f32 %v357, %v358
    %v360 = vrot.slane %v359, 4
    %v361 = vadd.f32 %v359, %v360
    %v362 = vrot.slane %v361, 2
    %v363 = vadd.f32 %v361, %v362
    %v364 = vrot.slane %v363, 1
    %v365 = vadd.f32 %v363, %v364
    %v366 = vsel %vm293, %v277, 0.0
    %v367 = vsel %vm293, %v278, 0.0
    %v368 = vadd.f32 %v366, %v367
    %v369 = vrot.slane %v368, 4
    %v370 = vadd.f32 %v368, %v369
    %v371 = vrot.slane %v370, 2
    %v372 = vadd.f32 %v370, %v371
    %v373 = vrot.slane %v372, 1
    %v374 = vadd.f32 %v372, %v373
    %v375 = vsel %vm293, %v279, 0.0
    %v376 = vsel %vm293, %v280, 0.0
    %v377 = vadd.f32 %v375, %v376
    %v378 = vrot.slane %v377, 4
    %v379 = vadd.f32 %v377, %v378
    %v380 = vrot.slane %v379, 2
    %v381 = vadd.f32 %v379, %v380
    %v382 = vrot.slane %v381, 1
    %v383 = vadd.f32 %v381, %v382
    %v384 = vsel %vm293, %v281, 0.0
    %v385 = vsel %vm293, %v282, 0.0
    %v386 = vadd.f32 %v384, %v385
    %v387 = vrot.slane %v386, 4
    %v388 = vadd.f32 %v386, %v387
    %v389 = vrot.slane %v388, 2
    %v390 = vadd.f32 %v388, %v389
    %v391 = vrot.slane %v390, 1
    %v392 = vadd.f32 %v390, %v391
    %v393 = vsel %vm293, %v283, 0.0
    %v394 = vsel %vm293, %v284, 0.0
    %v395 = vadd.f32 %v393, %v394
    %v396 = vrot.slane %v395, 4
    %v397 = vadd.f32 %v395, %v396
    %v398 = vrot.slane %v397, 2
    %v399 = vadd.f32 %v397, %v398
    %v400 = vrot.slane %v399, 1
    %v401 = vadd.f32 %v399, %v400
    %v402 = vsel %vm293, %v285, 0.0
    %v403 = vsel %vm293, %v286, 0.0
    %v404 = vadd.f32 %v402, %v403
    %v405 = vrot.slane %v404, 4
    %v406 = vadd.f32 %v404, %v405
    %v407 = vrot.slane %v406, 2
    %v408 = vadd.f32 %v406, %v407
    %v409 = vrot.slane %v408, 1
    %v410 = vadd.f32 %v408, %v409
    %v411 = vsel %vm293, %v287, 0.0
    %v412 = vsel %vm293, %v288, 0.0
    %v413 = vadd.f32 %v411, %v412
    %v414 = vrot.slane %v413, 4
    %v415 = vadd.f32 %v413, %v414
    %v416 = vrot.slane %v415, 2
    %v417 = vadd.f32 %v415, %v416
    %v418 = vrot.slane %v417, 1
    %v419 = vadd.f32 %v417, %v418
    %v420 = vsel %vm293, %v289, 0.0
    %v421 = vsel %vm293, %v290, 0.0
    %v422 = vadd.f32 %v420, %v421
    %v423 = vrot.slane %v422, 4
    %v424 = vadd.f32 %v422, %v423
    %v425 = vrot.slane %v424, 2
    %v426 = vadd.f32 %v424, %v425
    %v427 = vrot.slane %v426, 1
    %v428 = vadd.f32 %v426, %v427
    %v429 = vsel %vm293, %v291, 0.0
    %v430 = vsel %vm293, %v292, 0.0
    %v431 = vadd.f32 %v429, %v430
    %v432 = vrot.slane %v431, 4
    %v433 = vadd.f32 %v431, %v432
    %v434 = vrot.slane %v433, 2
    %v435 = vadd.f32 %v433, %v434
    %v436 = vrot.slane %v435, 1
    %v437 = vadd.f32 %v435, %v436
    %vm438 = vcmask 130048
    %v439 = vsel %vm438, %v82, 0.0
    %440 = vadd.xlane.f32.xlu0 %v439
    %v441 = vpop.xlane.xlu0 %440
    %v442 = vsel %vm438, %v83, 0.0
    %443 = vadd.xlane.f32.xlu0 %v442
    %v444 = vpop.xlane.xlu0 %443
    %v445 = vmax.f32 %v441, 1e-09
    %v446 = vmax.f32 %v444, 1e-09
    %v449 = vrot.slane %v445, 1
    %v450 = vrot.slane %v445, 2
    %v451 = vrot.slane %v445, 3
    %v452 = vrot.slane %v445, 4
    %v453 = vrot.slane %v445, 5
    %v454 = vrot.slane %v445, 6
    %v455 = vrot.slane %v445, 7
    %v456 = vrot.slane %v446, 1
    %v457 = vrot.slane %v446, 2
    %v458 = vrot.slane %v446, 3
    %v459 = vrot.slane %v446, 4
    %v460 = vrot.slane %v446, 5
    %v461 = vrot.slane %v446, 6
    %v462 = vrot.slane %v446, 7
    %v479 = vrcp.pop %v445
    %v480 = vmul.f32 %v302, %v479
    %v481 = vrcp.pop %v449
    %v482 = vmul.f32 %v311, %v481
    %v483 = vrcp.pop %v450
    %v484 = vmul.f32 %v320, %v483
    %v485 = vrcp.pop %v451
    %v486 = vmul.f32 %v329, %v485
    %v487 = vrcp.pop %v452
    %v488 = vmul.f32 %v338, %v487
    %v489 = vrcp.pop %v453
    %v490 = vmul.f32 %v347, %v489
    %v491 = vrcp.pop %v454
    %v492 = vmul.f32 %v356, %v491
    %v493 = vrcp.pop %v455
    %v494 = vmul.f32 %v365, %v493
    %v495 = vrcp.pop %v446
    %v496 = vmul.f32 %v374, %v495
    %v497 = vrcp.pop %v456
    %v498 = vmul.f32 %v383, %v497
    %v499 = vrcp.pop %v457
    %v500 = vmul.f32 %v392, %v499
    %v501 = vrcp.pop %v458
    %v502 = vmul.f32 %v401, %v501
    %v503 = vrcp.pop %v459
    %v504 = vmul.f32 %v410, %v503
    %v505 = vrcp.pop %v460
    %v506 = vmul.f32 %v419, %v505
    %v507 = vrcp.pop %v461
    %v508 = vmul.f32 %v428, %v507
    %v509 = vrcp.pop %v462
    %v510 = vmul.f32 %v437, %v509
    %v527 = vrot.slane %v482, 7
    %vm528 = vcmask 1041409
    %v529 = vsel %vm528, %v527, %v480
    %v530 = vrot.slane %v484, 6
    %vm531 = vcmask 1042434
    %v532 = vsel %vm531, %v530, %v529
    %v533 = vrot.slane %v486, 5
    %vm534 = vcmask 1043459
    %v535 = vsel %vm534, %v533, %v532
    %v536 = vrot.slane %v488, 4
    %vm537 = vcmask 1044484
    %v538 = vsel %vm537, %v536, %v535
    %v539 = vrot.slane %v490, 3
    %vm540 = vcmask 1045509
    %v541 = vsel %vm540, %v539, %v538
    %v542 = vrot.slane %v492, 2
    %vm543 = vcmask 1046534
    %v544 = vsel %vm543, %v542, %v541
    %v545 = vrot.slane %v494, 1
    %vm546 = vcmask 1047559
    %v547 = vsel %vm546, %v545, %v544
    %v548 = vrot.slane %v498, 7
    %v549 = vsel %vm528, %v548, %v496
    %v550 = vrot.slane %v500, 6
    %v551 = vsel %vm531, %v550, %v549
    %v552 = vrot.slane %v502, 5
    %v553 = vsel %vm534, %v552, %v551
    %v554 = vrot.slane %v504, 4
    %v555 = vsel %vm537, %v554, %v553
    %v556 = vrot.slane %v506, 3
    %v557 = vsel %vm540, %v556, %v555
    %v558 = vrot.slane %v508, 2
    %v559 = vsel %vm543, %v558, %v557
    %v560 = vrot.slane %v510, 1
    %v561 = vsel %vm546, %v560, %v559
    %v564 = vcombine.high %v547, 0.0
    %v566 = vunpack.c.l.s4 1983009808
    %v567 = vunpack.c.0.s8 %v566
    %v568 = vlaneseq
    %v569 = vshrl.u32 %v568, 7
    %v570 = vsub.s32 %v567, %v569
    %v571 = vrot.slane %v547, %v570
    %v573 = vunpack.c.l.s4 1983009808
    %v574 = vunpack.c.0.s8 %v573
    %v575 = vlaneseq
    %v576 = vshrl.u32 %v575, 7
    %v577 = vsub.s32 %v574, %v576
    %v578 = vrot.slane %v564, %v577
    %v579 = vcombine.high %v561, 0.0
    %v581 = vunpack.c.l.s4 1983009808
    %v582 = vunpack.c.0.s8 %v581
    %v583 = vlaneseq
    %v584 = vshrl.u32 %v583, 7
    %v585 = vsub.s32 %v582, %v584
    %v586 = vrot.slane %v561, %v585
    %v588 = vunpack.c.l.s4 1983009808
    %v589 = vunpack.c.0.s8 %v588
    %v590 = vlaneseq
    %v591 = vshrl.u32 %v590, 7
    %v592 = vsub.s32 %v589, %v591
    %v593 = vrot.slane %v579, %v592
    %v594 = vcombine.low %v571, %v586
    %v595 = vcombine.high %v571, %v586
    %v597 = vunpack.c.l.s4 1934713408
    %v598 = vunpack.c.0.s8 %v597
    %v599 = vlaneseq
    %v600 = vshrl.u32 %v599, 7
    %v601 = vsub.s32 %v598, %v600
    %v602 = vrot.slane %v594, %v601
    %v604 = vunpack.c.l.s4 1934713408
    %v605 = vunpack.c.0.s8 %v604
    %v606 = vlaneseq
    %v607 = vshrl.u32 %v606, 7
    %v608 = vsub.s32 %v605, %v607
    %v609 = vrot.slane %v595, %v608
    %v610 = vcombine.low %v578, %v593
    %v611 = vcombine.high %v578, %v593
    %v613 = vunpack.c.l.s4 1934713408
    %v614 = vunpack.c.0.s8 %v613
    %v615 = vlaneseq
    %v616 = vshrl.u32 %v615, 7
    %v617 = vsub.s32 %v614, %v616
    %v618 = vrot.slane %v610, %v617
    %v620 = vunpack.c.l.s4 1934713408
    %v621 = vunpack.c.0.s8 %v620
    %v622 = vlaneseq
    %v623 = vshrl.u32 %v622, 7
    %v624 = vsub.s32 %v621, %v623
    %v625 = vrot.slane %v611, %v624
    %v626 = vcombine.high %v602, 0.0
    %v627 = vcombine.high %v609, 0.0
    %v628 = vcombine.high %v618, 0.0
    %v629 = vcombine.high %v625, 0.0
    %631 = vrot.lane.b32.xlu0 %v626, 32
    %v632 = vpop.permute.xlu0 %631
    %635 = vrot.lane.b32.xlu0 %v609, 64
    %v636 = vpop.permute.xlu0 %635
    %639 = vrot.lane.b32.xlu0 %v627, 96
    %v640 = vpop.permute.xlu0 %639
    %643 = vrot.lane.b32.xlu0 %v628, 32
    %v644 = vpop.permute.xlu0 %643
    %647 = vrot.lane.b32.xlu0 %v625, 64
    %v648 = vpop.permute.xlu0 %647
    %651 = vrot.lane.b32.xlu0 %v629, 96
    %v652 = vpop.permute.xlu0 %651
    %v654 = vsel %vm293, %v602, %v632
    %vm655 = vcmask 523264
    %v656 = vsel %vm655, %v654, %v636
    %vm657 = vcmask 785408
    %v658 = vsel %vm657, %v656, %v640
    %v659 = vsel %vm293, %v618, %v644
    %v660 = vsel %vm655, %v659, %v648
    %v661 = vsel %vm657, %v660, %v652
    %v664 = vcombine.low %v658, %v661
    %v666 = vunpack.c.l.s4 1983009808
    %v667 = vunpack.c.0.s8 %v666
    %v668 = vlaneseq
    %v669 = vshrl.u32 %v668, 7
    %v670 = vsub.s32 %v667, %v669
    %v671 = vrot.slane %v664, %v670
    %673 = vst [vmem:[%s5] sm:$0xf] %v671
    %v674 = vlaneseq
    %v675 = vshrl.u32 %v674, 7
    %v676 = vsub.s32 0, %v675
    %v677 = vrot.slane %v84, %v676
    %679 = vbcast.lane.b32.xlu0 %v677, 256
    %v680 = vpop.permute.xlu0 %679
    %v681 = vlaneseq
    %v682 = vshrl.u32 %v681, 7
    %v683 = vsub.s32 1, %v682
    %v684 = vrot.slane %v84, %v683
    %686 = vbcast.lane.b32.xlu0 %v684, 256
    %v687 = vpop.permute.xlu0 %686
    %v690 = vrot.slane %v680, 1
    %v691 = vrot.slane %v680, 2
    %v692 = vrot.slane %v680, 3
    %v693 = vrot.slane %v680, 4
    %v694 = vrot.slane %v680, 5
    %v695 = vrot.slane %v680, 6
    %v696 = vrot.slane %v680, 7
    %v697 = vrot.slane %v687, 1
    %v698 = vrot.slane %v687, 2
    %v699 = vrot.slane %v687, 3
    %v700 = vrot.slane %v687, 4
    %v701 = vrot.slane %v687, 5
    %v702 = vrot.slane %v687, 6
    %v703 = vrot.slane %v687, 7
    %v720 = vmul.f32 %v480, %v680
    %v721 = vmul.f32 %v482, %v690
    %v722 = vmul.f32 %v484, %v691
    %v723 = vmul.f32 %v486, %v692
    %v724 = vmul.f32 %v488, %v693
    %v725 = vmul.f32 %v490, %v694
    %v726 = vmul.f32 %v492, %v695
    %v727 = vmul.f32 %v494, %v696
    %v728 = vmul.f32 %v496, %v687
    %v729 = vmul.f32 %v498, %v697
    %v730 = vmul.f32 %v500, %v698
    %v731 = vmul.f32 %v502, %v699
    %v732 = vmul.f32 %v504, %v700
    %v733 = vmul.f32 %v506, %v701
    %v734 = vmul.f32 %v508, %v702
    %v735 = vmul.f32 %v510, %v703
    %v752 = vrot.slane %v721, 7
    %v753 = vsel %vm528, %v752, %v720
    %v754 = vrot.slane %v722, 6
    %v755 = vsel %vm531, %v754, %v753
    %v756 = vrot.slane %v723, 5
    %v757 = vsel %vm534, %v756, %v755
    %v758 = vrot.slane %v724, 4
    %v759 = vsel %vm537, %v758, %v757
    %v760 = vrot.slane %v725, 3
    %v761 = vsel %vm540, %v760, %v759
    %v762 = vrot.slane %v726, 2
    %v763 = vsel %vm543, %v762, %v761
    %v764 = vrot.slane %v727, 1
    %v765 = vsel %vm546, %v764, %v763
    %v766 = vrot.slane %v729, 7
    %v767 = vsel %vm528, %v766, %v728
    %v768 = vrot.slane %v730, 6
    %v769 = vsel %vm531, %v768, %v767
    %v770 = vrot.slane %v731, 5
    %v771 = vsel %vm534, %v770, %v769
    %v772 = vrot.slane %v732, 4
    %v773 = vsel %vm537, %v772, %v771
    %v774 = vrot.slane %v733, 3
    %v775 = vsel %vm540, %v774, %v773
    %v776 = vrot.slane %v734, 2
    %v777 = vsel %vm543, %v776, %v775
    %v778 = vrot.slane %v735, 1
    %v779 = vsel %vm546, %v778, %v777
    %v782 = vsel %vm293, %v765, 0.0
    %v783 = vrot.slane %v782, 4
    %v784 = vadd.f32 %v782, %v783
    %v785 = vrot.slane %v784, 2
    %v786 = vadd.f32 %v784, %v785
    %v787 = vrot.slane %v786, 1
    %v788 = vadd.f32 %v786, %v787
    %v789 = vsel %vm293, %v779, 0.0
    %v790 = vrot.slane %v789, 4
    %v791 = vadd.f32 %v789, %v790
    %v792 = vrot.slane %v791, 2
    %v793 = vadd.f32 %v791, %v792
    %v794 = vrot.slane %v793, 1
    %v795 = vadd.f32 %v793, %v794
    %vm796 = vcmask 58368
    %v797 = vsel %vm796, %v84, 0.0
    %798 = vadd.xlane.f32.xlu0 %v797
    %v799 = vpop.xlane.xlu0 %798
    %v800 = vmax.f32 %v799, 1.0
    %v801 = vrcp.pop %v800
    %v803 = vrot.slane %v801, 1
    %v806 = vmul.f32 %v788, %v801
    %v807 = vmul.f32 %v795, %v803
    %v808 = vld [vmem:[%s3] sm:$0x3]
    %v809 = vlaneseq
    %v810 = vshrl.u32 %v809, 7
    %v811 = vsub.s32 0, %v810
    %v812 = vrot.slane %v806, %v811
    %v813 = vlaneseq
    %v814 = vshrl.u32 %v813, 7
    %v815 = vsub.s32 0, %v814
    %v816 = vrot.slane %v807, %v815
    %v817 = vmul.f32 %v812, %v808
    %v818 = vmul.f32 %v816, %v808
    %vm819 = vcmask 254976
    %v820 = vsel %vm819, %v817, 0.0
    %821 = vadd.xlane.f32.xlu0 %v820
    %v822 = vpop.xlane.xlu0 %821
    %v823 = vsel %vm819, %v818, 0.0
    %824 = vadd.xlane.f32.xlu0 %v823
    %v825 = vpop.xlane.xlu0 %824
    %v826 = vld [vmem:[%s4] sm:$0x1]
    %v828 = vlaneseq
    %v829 = vshrl.u32 %v828, 7
    %v830 = vsub.s32 0, %v829
    %v831 = vrot.slane %v826, %v830
    %833 = vbcast.lane.b32.xlu0 %v831, 256
    %v834 = vpop.permute.xlu0 %833
    %v836 = vadd.f32 %v822, %v834
    %v837 = vadd.f32 %v825, %v834
    %840 = vset.pattern.permute.xlu0 0
    %841 = vperm.xlu0 %840, %v836
    %v842 = vpop.permute.xlu0 %841
    %843 = vset.pattern.permute.xlu0 0
    %844 = vperm.xlu0 %843, %v837
    %v845 = vpop.permute.xlu0 %844
    %v846 = vlaneseq
    %v847 = vand.u32 %v846, 127
    %v848 = vlaneseq
    %v849 = vshrl.u32 %v848, 7
    %v850 = vsub.s32 %v847, %v849
    %v851 = vrot.slane %v842, %v850
    %v852 = vlaneseq
    %v853 = vshrl.u32 %v852, 7
    %v854 = vsub.s32 %v847, %v853
    %v855 = vrot.slane %v845, %v854
    %v856 = vsel %vm528, %v855, %v851
    %vm858 = vcmask 1041408
    %v859 = vsel %vm858, %v856, 0.0
    %vm860 = vcmask 15360
    %v861 = vsel %vm860, %v859, 0.0
    %862 = vst [vmem:[%s6] sm:$0xff] %v861
    // Predicated region
    $region30: #{_forward_core.1} parent=1 // pred_check
      _
    $region31: #{_forward_core.1} parent=1 // pred_check_branch
      %864 = sbr.rel (0) target = $region33
    $region32: #{_forward_core.1} parent=1 // pred_region
      _
    $region33: #{_forward_core.1} parent=1 // pred_fallthru
      _
    // Predicated region
    $region34: #{_forward_core.1} parent=1 // pred_check
      _
    $region35: #{_forward_core.1} parent=1 // pred_check_branch
      %866 = sbr.rel (0) target = $region37
    $region36: #{_forward_core.1} parent=1 // pred_region
      _
    $region37: #{_forward_core.1} parent=1 // pred_fallthru
      _
    // Predicated region
    $region38: #{_forward_core.1} parent=1 // pred_check
      _
    $region39: #{_forward_core.1} parent=1 // pred_check_branch
      %868 = sbr.rel (0) target = $region41
    $region40: #{_forward_core.1} parent=1 // pred_region
      _
    $region41: #{_forward_core.1} parent=1 // pred_fallthru
      _
    // Predicated region
    $region42: #{_forward_core.1} parent=1 // pred_check
      _
    $region43: #{_forward_core.1} parent=1 // pred_check_branch
      %870 = sbr.rel (0) target = $region45
    $region44: #{_forward_core.1} parent=1 // pred_region
      _
    $region45: #{_forward_core.1} parent=1 // pred_fallthru
      _
    %871 = vsyncpa [#allocation3], 1
    %872 = vsyncpa [#allocation5], 1

</llo_original>
